<compile_context>
chip_gen: v6e
topology: v6e:2x2x1
jax: 0.10.0
libtpu: 0.0.40
codegen_flags: <defaults>
</compile_context>

<pallas_src>
import numpy as np
import jax
import jax.numpy as jnp
from jax.experimental import pallas as pl
from jax.experimental.pallas import tpu as pltpu


def _round_up(v, m):
    return (v + m - 1) // m * m


def _pick_tile_rows(nrows, ncols, itemsize, target_bytes=1 << 20):
    """Largest multiple-of-8 divisor of `nrows` whose (tile, ncols) block is
    ~`target_bytes`; falls back to the full leading dim (always a legal block).
    ~1 MiB blocks already reach ~85% of HBM roofline and stay well inside the
    default scoped-VMEM limit on v5e/v6e/v7x (incl. double buffering)."""
    row_bytes = max(ncols * itemsize, 1)
    max_rows = max(8, target_bytes // row_bytes)
    limit = min(nrows, max_rows)
    best = None
    t = 8
    while t <= limit:
        if nrows % t == 0:
            best = t
        t += 8
    if best is None:
        best = nrows                      # block == full dim: always legal
    if best == nrows and nrows % 16 == 0:
        best = nrows // 2                 # keep >=2 grid steps for v7x's 2 TCs
    return best


# ----------------------------------------------------------------------------
# Kernel 1: full-tensor statistics (sum, sum of squares, min, max), gridded.
# ----------------------------------------------------------------------------
def _stats_kernel(x_ref, stats_ref, sum_ref, sq_ref, min_ref, max_ref):
    pid = pl.program_id(0)
    x = x_ref[...].astype(jnp.float32)            # (TILE, HW)

    @pl.when(pid == 0)
    def _init():
        sum_ref[...] = jnp.zeros_like(sum_ref)
        sq_ref[...] = jnp.zeros_like(sq_ref)
        min_ref[...] = jnp.full(min_ref.shape, jnp.inf, jnp.float32)
        max_ref[...] = jnp.full(max_ref.shape, -jnp.inf, jnp.float32)

    # Pure VPU elementwise accumulation every step (no XLU reduce per block).
    sum_ref[...] = sum_ref[...] + x
    sq_ref[...] = sq_ref[...] + x * x
    min_ref[...] = jnp.minimum(min_ref[...], x)
    max_ref[...] = jnp.maximum(max_ref[...], x)

    @pl.when(pid == pl.num_programs(0) - 1)
    def _finalize():
        stats_ref[0] = jnp.sum(sum_ref[...])
        stats_ref[1] = jnp.sum(sq_ref[...])
        stats_ref[2] = jnp.min(min_ref[...])
        stats_ref[3] = jnp.max(max_ref[...])


def _compute_stats(x2):
    """x2: (NC, HW).  Returns (sum, sumsq, min, max) as traced f32 scalars."""
    NC, HW = x2.shape
    tile = _pick_tile_rows(NC, HW, x2.dtype.itemsize)
    grid = (pl.cdiv(NC, tile),)
    # tile always divides NC (or equals it) by construction.
    stats = pl.pallas_call(
        _stats_kernel,
        out_shape=jax.ShapeDtypeStruct((4,), jnp.float32),
        grid=grid,
        in_specs=[pl.BlockSpec((tile, HW), lambda i: (i, 0))],
        out_specs=pl.BlockSpec(memory_space=pltpu.MemorySpace.SMEM),
        scratch_shapes=[pltpu.VMEM((tile, HW), jnp.float32)] * 4,
        compiler_params=pltpu.CompilerParams(
            dimension_semantics=("arbitrary",)),
        cost_estimate=pl.CostEstimate(
            flops=4 * NC * HW, transcendentals=0,
            bytes_accessed=NC * HW * x2.dtype.itemsize + 16),
    )(x2)
    return stats[0], stats[1], stats[2], stats[3]


# ----------------------------------------------------------------------------
# Kernel 2: apply the (pre-clamped) erase overlay, (TILE, HW) blocks.
# ----------------------------------------------------------------------------
def _erase_kernel(x_ref, ov_ref, m_ref, o_ref):
    x = x_ref[...]                                        # (TILE, HW) x.dtype
    ov = jnp.broadcast_to(ov_ref[...], x.shape)           # (1, HW) -> (TILE, HW)
    m = jnp.broadcast_to(m_ref[...], x.shape)             # int8 mask
    o_ref[...] = jnp.where(m != 0, ov, x)


def _apply_erase(x2, overlay_row, mask_row):
    NC, HW = x2.shape
    tile = _pick_tile_rows(NC, HW, x2.dtype.itemsize)
    grid = (pl.cdiv(NC, tile),)
    # TODO(synk): pass input_output_aliases={0: 0} when the caller donates x
    # to avoid allocating a second full-size HBM buffer.
    return pl.pallas_call(
        _erase_kernel,
        out_shape=jax.ShapeDtypeStruct((NC, HW), x2.dtype),
        grid=grid,
        in_specs=[
            pl.BlockSpec((tile, HW), lambda i: (i, 0)),   # x block
            pl.BlockSpec((1, HW), lambda i: (0, 0)),      # overlay row (x.dtype)
            pl.BlockSpec((1, HW), lambda i: (0, 0)),      # mask row (int8)
        ],
        out_specs=pl.BlockSpec((tile, HW), lambda i: (i, 0)),
        compiler_params=pltpu.CompilerParams(
            dimension_semantics=("parallel",)),
        cost_estimate=pl.CostEstimate(
            flops=2 * NC * HW, transcendentals=0,
            bytes_accessed=2 * NC * HW * x2.dtype.itemsize
            + HW * (x2.dtype.itemsize + 1)),
    )(x2, overlay_row, mask_row)


# ----------------------------------------------------------------------------
# Module-equivalent wrapper (glue: RNG for block count/positions, overlay build)
# ----------------------------------------------------------------------------
def random_erase(x, pct=0.2, max_n=4, np_seed=0, noise_key=None):
    """Pallas equivalent of RandomErase(pct, max_n).forward(x); x is NCHW."""
    N, C, H, W = x.shape
    rng = np.random.default_rng(np_seed)
    if noise_key is None:
        noise_key = jax.random.PRNGKey(0)

    # Same RNG-call order as the PyTorch reference: count first, then per-block
    # (stx, sty).  Exclusive upper bound (never max_n blocks) matches the spec.
    n_blocks = int(rng.integers(0, max_n))
    if n_blocks == 0:
        # Identity: skip both kernels entirely (saves 3x HBM passes).
        return x

    NC, HW = N * C, H * W
    x2 = x.reshape(NC, HW)                     # free reshape (contiguous)

    # --- statistics (gridded Pallas reduction kernel) -----------------------
    s, ss, bmin, bmax = _compute_stats(x2)
    cnt = float(x.size)
    mean = s / cnt
    # torch.std() is unbiased (divisor N-1).  Single-pass formula in f32; may
    # lose precision for huge tensors with large means (acceptable for noise).
    var = jnp.maximum(ss - cnt * mean * mean, 0.0) / (cnt - 1.0)
    std = jnp.sqrt(var)

    # --- build the (H, W) overlay + mask (tiny; host-driven like np.random) --
    szx, szy = int(pct * H), int(pct * W)
    overlay = jnp.zeros((H, W), jnp.float32)
    mask = jnp.zeros((H, W), jnp.int8)
    for _ in range(n_blocks):
        stx = int(rng.integers(0, H - szx))
        sty = int(rng.integers(0, W - szy))
        noise_key, sub = jax.random.split(noise_key)
        noise = mean + std * jax.random.normal(sub, (szx, szy), jnp.float32)
        overlay = jax.lax.dynamic_update_slice(overlay, noise, (stx, sty))
        mask = jax.lax.dynamic_update_slice(
            mask, jnp.ones((szx, szy), jnp.int8), (stx, sty))

    # Clamp is a no-op outside erased pixels (bounds come from the original x),
    # so clip just the overlay and keep the hot kernel a single select.
    overlay_row = jnp.clip(overlay, bmin, bmax).astype(x.dtype).reshape(1, HW)
    mask_row = mask.reshape(1, HW)

    # --- apply overlay (lane-dense Pallas elementwise kernel) ----------------
    out = _apply_erase(x2, overlay_row, mask_row)
    return out.reshape(N, C, H, W)


if __name__ == "__main__":
    key = jax.random.PRNGKey(0)
    kx, knoise = jax.random.split(key)
    x = jax.random.normal(kx, (2, 4, 16, 16), jnp.float32)   # NCHW

    # Deterministically pick a seed whose sampled block count is > 0 so both
    # Pallas kernels actually execute in this test.
    np_seed = next(s for s in range(64)
                   if int(np.random.default_rng(s).integers(0, 4)) > 0)

    y = random_erase(x, pct=0.2, max_n=4, np_seed=np_seed, noise_key=knoise)
    y = jax.block_until_ready(y)

    assert y.shape == x.shape and y.dtype == x.dtype
    # clamp bounds come from x itself, so the output stays inside [min, max]
    assert bool((y >= x.min()).all()) and bool((y <= x.max()).all())
    # at least one erased pixel must differ from the original
    assert bool(jnp.any(y != x))
    print("KERNEL_OK")
</pallas_src>

<mosaic_0001>
module attributes {stable_mosaic.version = 11 : i64} {
  func.func @_stats_kernel(%arg0: i32, %arg1: memref<8x256xf32, #tpu.memory_space<vmem>>, %arg2: memref<4xf32, #tpu.memory_space<smem>>, %arg3: memref<8x256xf32, #tpu.memory_space<vmem>>, %arg4: memref<8x256xf32, #tpu.memory_space<vmem>>, %arg5: memref<8x256xf32, #tpu.memory_space<vmem>>, %arg6: memref<8x256xf32, #tpu.memory_space<vmem>>) attributes {dimension_semantics = [#tpu.dimension_semantics<arbitrary>], iteration_bounds = array<i64: 1>, scalar_prefetch = 0 : i64, scratch_operands = 4 : i64, tpu.core_type = #tpu.core_type<tc>, window_params = [{transform_indices = @transform_0, window_bounds = array<i64: 8, 256>}, {transform_indices = @transform_1, window_bounds = array<i64: 4>}]} {
    %c0 = arith.constant 0 : index
    %c0_0 = arith.constant 0 : index
    %0 = vector.load %arg1[%c0, %c0_0] : memref<8x256xf32, #tpu.memory_space<vmem>>, vector<8x256xf32>
    %c0_i32 = arith.constant 0 : i32
    %1 = arith.cmpi eq, %arg0, %c0_i32 : i32
    %2 = arith.extui %1 : i1 to i32
    %c0_i32_1 = arith.constant 0 : i32
    %3 = arith.cmpi ne, %2, %c0_i32_1 : i32
    scf.if %3 {
      %cst = arith.constant 0.000000e+00 : f32
      %20 = vector.broadcast %cst : f32 to vector<8x256xf32>
      %c0_20 = arith.constant 0 : index
      %c0_21 = arith.constant 0 : index
      %21 = vector.load %arg3[%c0_20, %c0_21] : memref<8x256xf32, #tpu.memory_space<vmem>>, vector<8x256xf32>
      tpu.vector_store %arg3[%c0_20, %c0_21], %20 {strides = array<i32>} : memref<8x256xf32, #tpu.memory_space<vmem>>, vector<8x256xf32>,
      %cst_22 = arith.constant 0.000000e+00 : f32
      %22 = vector.broadcast %cst_22 : f32 to vector<8x256xf32>
      %c0_23 = arith.constant 0 : index
      %c0_24 = arith.constant 0 : index
      %23 = vector.load %arg4[%c0_23, %c0_24] : memref<8x256xf32, #tpu.memory_space<vmem>>, vector<8x256xf32>
      tpu.vector_store %arg4[%c0_23, %c0_24], %22 {strides = array<i32>} : memref<8x256xf32, #tpu.memory_space<vmem>>, vector<8x256xf32>,
      %cst_25 = arith.constant 0x7F800000 : f32
      %24 = vector.broadcast %cst_25 : f32 to vector<8x256xf32>
      %c0_26 = arith.constant 0 : index
      %c0_27 = arith.constant 0 : index
      %25 = vector.load %arg5[%c0_26, %c0_27] : memref<8x256xf32, #tpu.memory_space<vmem>>, vector<8x256xf32>
      tpu.vector_store %arg5[%c0_26, %c0_27], %24 {strides = array<i32>} : memref<8x256xf32, #tpu.memory_space<vmem>>, vector<8x256xf32>,
      %cst_28 = arith.constant 0xFF800000 : f32
      %26 = vector.broadcast %cst_28 : f32 to vector<8x256xf32>
      %c0_29 = arith.constant 0 : index
      %c0_30 = arith.constant 0 : index
      %27 = vector.load %arg6[%c0_29, %c0_30] : memref<8x256xf32, #tpu.memory_space<vmem>>, vector<8x256xf32>
      tpu.vector_store %arg6[%c0_29, %c0_30], %26 {strides = array<i32>} : memref<8x256xf32, #tpu.memory_space<vmem>>, vector<8x256xf32>,
    } else {
    }
    %c0_2 = arith.constant 0 : index
    %c0_3 = arith.constant 0 : index
    %4 = vector.load %arg3[%c0_2, %c0_3] : memref<8x256xf32, #tpu.memory_space<vmem>>, vector<8x256xf32>
    %5 = arith.addf %4, %0 : vector<8x256xf32>
    %c0_4 = arith.constant 0 : index
    %c0_5 = arith.constant 0 : index
    %6 = vector.load %arg3[%c0_4, %c0_5] : memref<8x256xf32, #tpu.memory_space<vmem>>, vector<8x256xf32>
    tpu.vector_store %arg3[%c0_4, %c0_5], %5 {strides = array<i32>} : memref<8x256xf32, #tpu.memory_space<vmem>>, vector<8x256xf32>,
    %c0_6 = arith.constant 0 : index
    %c0_7 = arith.constant 0 : index
    %7 = vector.load %arg4[%c0_6, %c0_7] : memref<8x256xf32, #tpu.memory_space<vmem>>, vector<8x256xf32>
    %8 = arith.mulf %0, %0 : vector<8x256xf32>
    %9 = arith.addf %7, %8 : vector<8x256xf32>
    %c0_8 = arith.constant 0 : index
    %c0_9 = arith.constant 0 : index
    %10 = vector.load %arg4[%c0_8, %c0_9] : memref<8x256xf32, #tpu.memory_space<vmem>>, vector<8x256xf32>
    tpu.vector_store %arg4[%c0_8, %c0_9], %9 {strides = array<i32>} : memref<8x256xf32, #tpu.memory_space<vmem>>, vector<8x256xf32>,
    %c0_10 = arith.constant 0 : index
    %c0_11 = arith.constant 0 : index
    %11 = vector.load %arg5[%c0_10, %c0_11] : memref<8x256xf32, #tpu.memory_space<vmem>>, vector<8x256xf32>
    %12 = arith.minimumf %11, %0 : vector<8x256xf32>
    %c0_12 = arith.constant 0 : index
    %c0_13 = arith.constant 0 : index
    %13 = vector.load %arg5[%c0_12, %c0_13] : memref<8x256xf32, #tpu.memory_space<vmem>>, vector<8x256xf32>
    tpu.vector_store %arg5[%c0_12, %c0_13], %12 {strides = array<i32>} : memref<8x256xf32, #tpu.memory_space<vmem>>, vector<8x256xf32>,
    %c0_14 = arith.constant 0 : index
    %c0_15 = arith.constant 0 : index
    %14 = vector.load %arg6[%c0_14, %c0_15] : memref<8x256xf32, #tpu.memory_space<vmem>>, vector<8x256xf32>
    %15 = arith.maximumf %14, %0 : vector<8x256xf32>
    %c0_16 = arith.constant 0 : index
    %c0_17 = arith.constant 0 : index
    %16 = vector.load %arg6[%c0_16, %c0_17] : memref<8x256xf32, #tpu.memory_space<vmem>>, vector<8x256xf32>
    tpu.vector_store %arg6[%c0_16, %c0_17], %15 {strides = array<i32>} : memref<8x256xf32, #tpu.memory_space<vmem>>, vector<8x256xf32>,
    %c0_i32_18 = arith.constant 0 : i32
    %17 = arith.cmpi eq, %arg0, %c0_i32_18 : i32
    %18 = arith.extui %17 : i1 to i32
    %c0_i32_19 = arith.constant 0 : i32
    %19 = arith.cmpi ne, %18, %c0_i32_19 : i32
    scf.if %19 {
      %c0_20 = arith.constant 0 : index
      %c0_21 = arith.constant 0 : index
      %20 = vector.load %arg3[%c0_20, %c0_21] : memref<8x256xf32, #tpu.memory_space<vmem>>, vector<8x256xf32>
      %21 = vector.shape_cast %20 : vector<8x256xf32> to vector<1x8x256xf32>
      %cst = arith.constant dense<0.000000e+00> : vector<1xf32>
      %22 = vector.multi_reduction <add>, %21, %cst [1, 2] : vector<1x8x256xf32> to vector<1xf32>
      %23 = vector.shape_cast %22 : vector<1xf32> to vector<1x1x1xf32>
      %24 = vector.extract %23[0, 0, 0] : f32 from vector<1x1x1xf32>
      %c0_22 = arith.constant 0 : index
      %25 = memref.load %arg2[%c0_22] : memref<4xf32, #tpu.memory_space<smem>>
      memref.store %24, %arg2[%c0_22] : memref<4xf32, #tpu.memory_space<smem>>
      %c0_23 = arith.constant 0 : index
      %c0_24 = arith.constant 0 : index
      %26 = vector.load %arg4[%c0_23, %c0_24] : memref<8x256xf32, #tpu.memory_space<vmem>>, vector<8x256xf32>
      %27 = vector.shape_cast %26 : vector<8x256xf32> to vector<1x8x256xf32>
      %cst_25 = arith.constant dense<0.000000e+00> : vector<1xf32>
      %28 = vector.multi_reduction <add>, %27, %cst_25 [1, 2] : vector<1x8x256xf32> to vector<1xf32>
      %29 = vector.shape_cast %28 : vector<1xf32> to vector<1x1x1xf32>
      %30 = vector.extract %29[0, 0, 0] : f32 from vector<1x1x1xf32>
      %c1 = arith.constant 1 : index
      %31 = memref.load %arg2[%c1] : memref<4xf32, #tpu.memory_space<smem>>
      memref.store %30, %arg2[%c1] : memref<4xf32, #tpu.memory_space<smem>>
      %c0_26 = arith.constant 0 : index
      %c0_27 = arith.constant 0 : index
      %32 = vector.load %arg5[%c0_26, %c0_27] : memref<8x256xf32, #tpu.memory_space<vmem>>, vector<8x256xf32>
      %33 = vector.shape_cast %32 : vector<8x256xf32> to vector<1x8x256xf32>
      %cst_28 = arith.constant dense<0x7F800000> : vector<1xf32>
      %34 = vector.multi_reduction <minimumf>, %33, %cst_28 [1, 2] : vector<1x8x256xf32> to vector<1xf32>
      %35 = vector.shape_cast %34 : vector<1xf32> to vector<1x1x1xf32>
      %36 = vector.extract %35[0, 0, 0] : f32 from vector<1x1x1xf32>
      %c2 = arith.constant 2 : index
      %37 = memref.load %arg2[%c2] : memref<4xf32, #tpu.memory_space<smem>>
      memref.store %36, %arg2[%c2] : memref<4xf32, #tpu.memory_space<smem>>
      %c0_29 = arith.constant 0 : index
      %c0_30 = arith.constant 0 : index
      %38 = vector.load %arg6[%c0_29, %c0_30] : memref<8x256xf32, #tpu.memory_space<vmem>>, vector<8x256xf32>
      %39 = vector.shape_cast %38 : vector<8x256xf32> to vector<1x8x256xf32>
      %cst_31 = arith.constant dense<0xFF800000> : vector<1xf32>
      %40 = vector.multi_reduction <maximumf>, %39, %cst_31 [1, 2] : vector<1x8x256xf32> to vector<1xf32>
      %41 = vector.shape_cast %40 : vector<1xf32> to vector<1x1x1xf32>
      %42 = vector.extract %41[0, 0, 0] : f32 from vector<1x1x1xf32>
      %c3 = arith.constant 3 : index
      %43 = memref.load %arg2[%c3] : memref<4xf32, #tpu.memory_space<smem>>
      memref.store %42, %arg2[%c3] : memref<4xf32, #tpu.memory_space<smem>>
    } else {
    }
    return
  }
  func.func @transform_0(%arg0: i32) -> (i32, i32) {
    %c0_i32 = arith.constant 0 : i32
    %c0_i32_0 = arith.constant 0 : i32
    return %arg0, %c0_i32 : i32, i32
  }
  func.func @transform_1(%arg0: i32) -> i32 {
    %c0_i32 = arith.constant 0 : i32
    %c0_i32_0 = arith.constant 0 : i32
    return %c0_i32 : i32
  }
}

</mosaic_0001>

<llo_original>
// kernel: tpu_custom_call.1
$region0: #{tpu_custom_call.1}
  #allocation0 [shape = 'u32[]', space=smem, size = 0x4, offset = 0x4, fixed_abs, tag = 'smem constant byte address 0x4 - core index']
  #allocation1 [shape = 'u32[144,128]{1,0:T(1,128)}', space=vmem, size = 0x12000, scoped, tag = 'internal scratch']
  #allocation2 [shape = 'f32[8,256]{1,0:T(8,128)}', space=vmem, size = 0x2000, scoped, tag = 'scratch operand']
  #allocation3 [shape = 'f32[8,256]{1,0:T(8,128)}', space=vmem, size = 0x2000, scoped, tag = 'scratch operand']
  #allocation4 [shape = 'f32[8,256]{1,0:T(8,128)}', space=vmem, size = 0x2000, scoped, tag = 'scratch operand']
  #allocation5 [shape = 'f32[8,256]{1,0:T(8,128)}', space=vmem, size = 0x2000, scoped, tag = 'scratch operand']
  %s0 = inlined_call_operand.hbm [shape: f32[8,256], index: 0, kind: input, shape index: {}]
  %s1 = inlined_call_operand.hbm [shape: f32[4], index: 1, kind: output, shape index: {}]
  %s2 = sld [smem:[#allocation0]]
  $region26: #{tpu_custom_call.1} parent=0
    _
  %s4 = ssub.s32 1, %s2
  %s5 = scalar_select 0, %s4, %s2
  $region1: #{tpu_custom_call.1} parent=0
    #allocation6 [shape = 'u8[8192]{0}', space=vmem, size = 0x2000, scoped, tag = 'input window, operand 0, single buffered']
    #allocation7 [shape = 's32[1]{0}', space=sflag, size = 0x4, scoped, tag = 'scoped memory for tpu_custom_call.1']
    #allocation8 [shape = 's32[1]{0}', space=sflag, size = 0x4, scoped, tag = 'scoped memory for tpu_custom_call.1']
    #allocation9 [shape = 'u8[512]{0}', space=smem, size = 0x200, scoped, tag = 'output window, operand 0, single buffered']
    %6 = vsyncpa [#allocation7], 0
    %7 = vsyncpa [#allocation8], 0
    // Predicated region
    $region2: #{tpu_custom_call.1} parent=1 // pred_check
      _
    $region3: #{tpu_custom_call.1} parent=1 // pred_check_branch
      %9 = sbr.rel (0) target = $region5
    $region4: #{tpu_custom_call.1} parent=1 // pred_region
      %s11 = ssub.s32 256, 256
      %12 = vsyncadd [#allocation7], %s11
      %s14 = sshll.u32 [#allocation6], 4
      %s15 = int_to_ptr.vmem [resolvable:$true] %s14
      %17 = dma.hbm_to_vmem [thread:$0]  %s0, 256, %s15, [#allocation7]
    $region5: #{tpu_custom_call.1} parent=1 // pred_fallthru
      _
    // Predicated region
    $region6: #{tpu_custom_call.1} parent=1 // pred_check
      _
    $region7: #{tpu_custom_call.1} parent=1 // pred_check_branch
      %19 = sbr.rel (0) target = $region9
    $region8: #{tpu_custom_call.1} parent=1 // pred_region
      %20 = dma.done [#allocation7], 256
    $region9: #{tpu_custom_call.1} parent=1 // pred_fallthru
      _
    %v21 = vld [vmem:[#allocation6] sm:$0xff]
    %v22 = vld [vmem:[#allocation6 + $0x8] sm:$0xff]
    %p23 = scmp.eq.s32.totalorder 0, 0
    // Predicated region
    $region10: #{tpu_custom_call.1} parent=1 // pred_check
      %p24 = pneg %p23
    $region11: #{tpu_custom_call.1} parent=1 // pred_check_branch
      %26 = sbr.rel (%p24) target = $region13
    $region12: #{tpu_custom_call.1} parent=1 // pred_region
      %27 = vst [vmem:[#allocation2] sm:$0xff] 0.0
      %28 = vst [vmem:[#allocation2 + $0x8] sm:$0xff] 0.0
      %29 = vst [vmem:[#allocation3] sm:$0xff] 0.0
      %30 = vst [vmem:[#allocation3 + $0x8] sm:$0xff] 0.0
      %31 = vst [vmem:[#allocation4] sm:$0xff] inf
      %32 = vst [vmem:[#allocation4 + $0x8] sm:$0xff] inf
      %33 = vst [vmem:[#allocation5] sm:$0xff] -inf
      %34 = vst [vmem:[#allocation5 + $0x8] sm:$0xff] -inf
    $region13: #{tpu_custom_call.1} parent=1 // pred_fallthru
      _
    %v35 = vld [vmem:[#allocation2] sm:$0xff]
    %v36 = vld [vmem:[#allocation2 + $0x8] sm:$0xff]
    %v37 = vadd.f32 %v35, %v21
    %v38 = vadd.f32 %v36, %v22
    %39 = vst [vmem:[#allocation2] sm:$0xff] %v37
    %40 = vst [vmem:[#allocation2 + $0x8] sm:$0xff] %v38
    %v41 = vld [vmem:[#allocation3] sm:$0xff]
    %v42 = vld [vmem:[#allocation3 + $0x8] sm:$0xff]
    %v43 = vmul.f32 %v21, %v21
    %v44 = vmul.f32 %v22, %v22
    %v45 = vadd.f32 %v41, %v43
    %v46 = vadd.f32 %v42, %v44
    %47 = vst [vmem:[#allocation3] sm:$0xff] %v45
    %48 = vst [vmem:[#allocation3 + $0x8] sm:$0xff] %v46
    %v49 = vld [vmem:[#allocation4] sm:$0xff]
    %v50 = vld [vmem:[#allocation4 + $0x8] sm:$0xff]
    %v51 = vmin.f32 %v49, %v21
    %v52 = vmin.f32 %v50, %v22
    %53 = vst [vmem:[#allocation4] sm:$0xff] %v51
    %54 = vst [vmem:[#allocation4 + $0x8] sm:$0xff] %v52
    %v55 = vld [vmem:[#allocation5] sm:$0xff]
    %v56 = vld [vmem:[#allocation5 + $0x8] sm:$0xff]
    %v57 = vmax.f32 %v55, %v21
    %v58 = vmax.f32 %v56, %v22
    %59 = vst [vmem:[#allocation5] sm:$0xff] %v57
    %60 = vst [vmem:[#allocation5 + $0x8] sm:$0xff] %v58
    // Predicated region
    $region14: #{tpu_custom_call.1} parent=1 // pred_check
      %p61 = pneg %p23
    $region15: #{tpu_custom_call.1} parent=1 // pred_check_branch
      %63 = sbr.rel (%p61) target = $region17
    $region16: #{tpu_custom_call.1} parent=1 // pred_region
      %v64 = vld [vmem:[#allocation2] sm:$0xff]
      %v65 = vld [vmem:[#allocation2 + $0x8] sm:$0xff]
      %v66 = vadd.f32 %v64, %v65
      %67 = vadd.xlane.f32.xlu0 %v66
      %v68 = vpop.xlane.xlu0 %67
      %v69 = vrot.slane %v68, 4
      %v70 = vadd.f32 %v68, %v69
      %v71 = vrot.slane %v70, 2
      %v72 = vadd.f32 %v70, %v71
      %v73 = vrot.slane %v72, 1
      %v74 = vadd.f32 %v72, %v73
      %s75 = vtos %v74
      %s76 = scalar_lea.smem [#allocation9], 0
      %77 = sst [smem:[%s76]] %s75
      %v78 = vld [vmem:[#allocation3] sm:$0xff]
      %v79 = vld [vmem:[#allocation3 + $0x8] sm:$0xff]
      %v80 = vadd.f32 %v78, %v79
      %81 = vadd.xlane.f32.xlu0 %v80
      %v82 = vpop.xlane.xlu0 %81
      %v83 = vrot.slane %v82, 4
      %v84 = vadd.f32 %v82, %v83
      %v85 = vrot.slane %v84, 2
      %v86 = vadd.f32 %v84, %v85
      %v87 = vrot.slane %v86, 1
      %v88 = vadd.f32 %v86, %v87
      %s89 = vtos %v88
      %s90 = scalar_lea.smem [#allocation9], 1
      %91 = sst [smem:[%s90]] %s89
      %v92 = vld [vmem:[#allocation4] sm:$0xff]
      %v93 = vld [vmem:[#allocation4 + $0x8] sm:$0xff]
      %v94 = vmin.f32 %v92, %v93
      %95 = vmin.xlane.f32.xlu0 %v94
      %v96 = vpop.xlane.xlu0 %95
      %v97 = vrot.slane %v96, 4
      %v98 = vmin.f32 %v96, %v97
      %v99 = vrot.slane %v98, 2
      %v100 = vmin.f32 %v98, %v99
      %v101 = vrot.slane %v100, 1
      %v102 = vmin.f32 %v100, %v101
      %s103 = vtos %v102
      %s104 = scalar_lea.smem [#allocation9], 2
      %105 = sst [smem:[%s104]] %s103
      %v106 = vld [vmem:[#allocation5] sm:$0xff]
      %v107 = vld [vmem:[#allocation5 + $0x8] sm:$0xff]
      %v108 = vmax.f32 %v106, %v107
      %109 = vmax.xlane.f32.xlu0 %v108
      %v110 = vpop.xlane.xlu0 %109
      %v111 = vrot.slane %v110, 4
      %v112 = vmax.f32 %v110, %v111
      %v113 = vrot.slane %v112, 2
      %v114 = vmax.f32 %v112, %v113
      %v115 = vrot.slane %v114, 1
      %v116 = vmax.f32 %v114, %v115
      %s117 = vtos %v116
      %s118 = scalar_lea.smem [#allocation9], 3
      %119 = sst [smem:[%s118]] %s117
    $region17: #{tpu_custom_call.1} parent=1 // pred_fallthru
      _
    // Predicated region
    $region18: #{tpu_custom_call.1} parent=1 // pred_check
      _
    $region19: #{tpu_custom_call.1} parent=1 // pred_check_branch
      %121 = sbr.rel (0) target = $region21
    $region20: #{tpu_custom_call.1} parent=1 // pred_region
      %s123 = ssub.s32 16, 16
      %124 = vsyncadd [#allocation8], %s123
      %127 = dma.smem_to_hbm [#allocation9], 16, %s1, [#allocation8]
    $region21: #{tpu_custom_call.1} parent=1 // pred_fallthru
      _
    // Predicated region
    $region22: #{tpu_custom_call.1} parent=1 // pred_check
      _
    $region23: #{tpu_custom_call.1} parent=1 // pred_check_branch
      %129 = sbr.rel (0) target = $region25
    $region24: #{tpu_custom_call.1} parent=1 // pred_region
      %130 = dma.done [#allocation8], 16
    $region25: #{tpu_custom_call.1} parent=1 // pred_fallthru
      _
    %131 = sfence
    %132 = vsyncpa [#allocation7], 1
    %133 = vsyncpa [#allocation8], 1

</llo_original>
